<compile_context>
chip_gen: v5e
topology: v5e:2x2
jax: 0.10.0
libtpu: 0.0.40
codegen_flags: <defaults>
</compile_context>

<pallas_src>
import functools

import jax
import jax.numpy as jnp
from jax import lax
from jax.experimental import pallas as pl
from jax.experimental.pallas import tpu as pltpu


def _depth_projector_kernel(C, H_in, W_in, contract_w, with_mask,
                            matmul_dtype, approx_recip,
                            pix_ref, depth_ref, invk_ref, p_ref, img_ref,
                            *out_refs):
    f32 = jnp.float32
    b = pl.program_id(0)

    warped_ref = out_refs[0]
    tlen = warped_ref.shape[-1]              # output stripe width (lanes)

    # Static pixel coordinates of this output stripe (the PyTorch pix_coords
    # buffer, precomputed host-side).
    gx = pix_ref[0:1, :]                     # (1, T) x (column) coordinate
    gy = pix_ref[1:2, :]                     # (1, T) y (row)    coordinate
    depth = depth_ref[...]                   # (1, T)

    # cam = depth * (inv_K[:3, :3] @ [x, y, 1])
    cam = [(invk_ref[b, r, 0] * gx + invk_ref[b, r, 1] * gy
            + invk_ref[b, r, 2]) * depth for r in range(3)]

    # proj = P[:3, :] @ [cam; 1],  P = K @ T  (SMEM scalars)
    proj = [p_ref[b, r, 0] * cam[0] + p_ref[b, r, 1] * cam[1]
            + p_ref[b, r, 2] * cam[2] + p_ref[b, r, 3] for r in range(3)]

    # One reciprocal + two muls instead of two divides.
    inv_z = pl.reciprocal(proj[2] + 1e-8, approx=approx_recip)
    px = proj[0] * inv_z
    py = proj[1] * inv_z

    # align_corners=True + padding_mode='border': sample at clip(px, 0, W-1).
    # (The [-1, 1] normalize / denormalize round trip is an exact identity.)
    ix = jnp.clip(px, 0.0, float(W_in - 1))
    iy = jnp.clip(py, 0.0, float(H_in - 1))
    x0 = ix.astype(jnp.int32)                # ix >= 0  ->  trunc == floor
    y0 = iy.astype(jnp.int32)
    wx = ix - x0.astype(f32)
    wy = iy - y0.astype(f32)
    x1 = jnp.minimum(x0 + 1, W_in - 1)       # weight is 0 whenever clamped
    y1 = jnp.minimum(y0 + 1, H_in - 1)

    def lin_weights(i0, i1, w, n, dtype):
        # weights[k, p] = bilinear weight of input index k for output pixel p
        rows = lax.broadcasted_iota(jnp.int32, (n, tlen), 0)
        w_lo = (1.0 - w).astype(dtype)
        w_hi = w.astype(dtype)
        zero = jnp.zeros((), dtype)
        return (jnp.where(rows == i0, w_lo, zero)
                + jnp.where(rows == i1, w_hi, zero))

    if contract_w:
        mxu_w = lin_weights(x0, x1, wx, W_in, matmul_dtype)   # (W_in, T)
        vpu_w = lin_weights(y0, y1, wy, H_in, f32)            # (H_in, T)
        r_dim = H_in
    else:
        mxu_w = lin_weights(y0, y1, wy, H_in, matmul_dtype)   # (H_in, T)
        vpu_w = lin_weights(x0, x1, wx, W_in, f32)            # (W_in, T)
        r_dim = W_in

    # Stage 1 (MXU): interpolate along the contraction axis for every
    # (channel, non-contracted row):  (C*r_dim, K) @ (K, T) -> (C*r_dim, T).
    xint = jnp.dot(img_ref[...], mxu_w, preferred_element_type=f32)

    # Stage 2 (VPU + XLU sublane reduce), unrolled over channels: no (C,R,T)
    # temporary, no reshape.
    chans = []
    for c in range(C):
        xc = xint[c * r_dim:(c + 1) * r_dim, :]
        chans.append(jnp.sum(xc * vpu_w, axis=0, keepdims=True))
    warped = jnp.concatenate(chans, axis=0)                   # (C, T) f32
    warped_ref[...] = warped.astype(warped_ref.dtype)

    if with_mask:
        mask_ref = out_refs[1]
        # Equivalent to the inclusive [-1, 1] check on normalized coords.
        valid = ((px >= 0.0) & (px <= float(W_in - 1))
                 & (py >= 0.0) & (py <= float(H_in - 1)))
        mask_ref[...] = valid.astype(mask_ref.dtype)


def _vmem_limits():
    """(vmem_limit_bytes, working-set budget) sized per TPU generation."""
    phys = None
    get_info = getattr(pltpu, "get_tpu_info", None)
    if get_info is not None:
        try:
            phys = getattr(get_info(), "vmem_capacity_bytes", None)
        except Exception:
            phys = None
    if phys is None:
        phys = 64 * 1024 * 1024                       # conservative: assume v7x
    if phys >= 100 * 1024 * 1024:                     # v5e / v6e: 128 MiB VMEM
        return 96 * 1024 * 1024, 72 * 1024 * 1024
    return 48 * 1024 * 1024, 40 * 1024 * 1024         # v7x: 64 MiB VMEM


def _select_tile(HW, C, r_dim, k_dim, mm_bytes, out_bytes, with_mask, budget):
    """Largest multiple-of-128 stripe width that fits the VMEM budget."""
    img_block = C * r_dim * k_dim * mm_bytes
    fixed = 2 * img_block + (1 << 20)                  # dbl-buffered img + slack
    per_lane = (C * r_dim * 4                          # xint (f32)
                + r_dim * 4                            # stage-2 product temp
                + k_dim * mm_bytes                     # MXU weight matrix
                + r_dim * 4                            # VPU weight matrix
                + 2 * (C * out_bytes + 4 + 8           # out/depth/pix blocks x2
                       + (4 if with_mask else 0))
                + 64)                                  # (1,T) coordinate temps
    avail = budget - fixed
    max_tile = 128
    if avail > 128 * per_lane:
        max_tile = (avail // per_lane) // 128 * 128
    hw_up = -(-HW // 128) * 128
    tile = int(max(128, min(max_tile, 4096, hw_up)))
    n_tiles = -(-HW // tile)
    return tile, n_tiles, n_tiles * tile


def depth_projector_forward(depth, inv_K, T, K, img, *, is_mask=False,
                            matmul_dtype=jnp.bfloat16, approx_recip=False,
                            tile=None):
    """Pallas equivalent of DepthProjector.forward (NCHW in / NCHW out)."""
    B, _, H, W = depth.shape
    Bi, C, H_in, W_in = img.shape
    assert Bi == B and (H_in, W_in) == (H, W), \
        "kernel assumes img and depth share the same spatial size"
    HW = H * W
    f32 = jnp.float32
    out_dtype = img.dtype
    matmul_dtype = jnp.dtype(matmul_dtype)

    # MXU contraction axis = larger spatial dim; VPU reduction = smaller one.
    contract_w = W_in >= H_in
    if contract_w:
        k_dim, r_dim = W_in, H_in
        img2d = img.reshape(B, C * H_in, W_in)
    else:
        k_dim, r_dim = H_in, W_in
        img2d = jnp.transpose(img, (0, 1, 3, 2)).reshape(B, C * W_in, H_in)
    img2d = img2d.astype(matmul_dtype)        # host-side cast: halves DMA bytes

    mm_bytes = matmul_dtype.itemsize
    out_bytes = jnp.dtype(out_dtype).itemsize
    vmem_limit, vmem_budget = _vmem_limits()
    if tile is None:
        tile, n_tiles, HW_pad = _select_tile(HW, C, r_dim, k_dim, mm_bytes,
                                             out_bytes, bool(is_mask),
                                             vmem_budget)
    else:
        assert tile % 128 == 0
        n_tiles = -(-HW // tile)
        HW_pad = n_tiles * tile

    # Static pixel-coordinate grid, padded (edge mode) to HW_pad so every
    # output stripe is lane-dense; padded lanes are sliced off afterwards.
    gxx, gyy = jnp.meshgrid(jnp.arange(W, dtype=f32),
                            jnp.arange(H, dtype=f32), indexing="xy")
    pix = jnp.stack([gxx.reshape(-1), gyy.reshape(-1)], axis=0)   # (2, HW)
    depth_f = depth.reshape(B, 1, HW).astype(f32)
    if HW_pad != HW:
        pad = HW_pad - HW
        pix = jnp.pad(pix, ((0, 0), (0, pad)), mode="edge")
        depth_f = jnp.pad(depth_f, ((0, 0), (0, 0), (0, pad)), mode="edge")

    inv_K3 = inv_K.astype(f32)[:, :3, :3]                         # (B, 3, 3)
    P3 = jnp.matmul(K.astype(f32), T.astype(f32))[:, :3, :]       # (B, 3, 4)

    kern = functools.partial(_depth_projector_kernel, C, H_in, W_in,
                             bool(contract_w), bool(is_mask), matmul_dtype,
                             bool(approx_recip))
    smem = pl.BlockSpec(memory_space=pltpu.MemorySpace.SMEM)
    in_specs = [
        pl.BlockSpec((2, tile), lambda b, t: (0, t)),              # pix grid
        pl.BlockSpec((None, 1, tile), lambda b, t: (b, 0, t)),     # depth
        smem,                                                      # inv_K[:, :3, :3]
        smem,                                                      # P = (K@T)[:, :3, :]
        pl.BlockSpec((None, C * r_dim, k_dim), lambda b, t: (b, 0, 0)),  # img
    ]
    warped_spec = pl.BlockSpec((None, C, tile), lambda b, t: (b, 0, t))
    warped_sds = jax.ShapeDtypeStruct((B, C, HW_pad), out_dtype)
    if is_mask:
        out_shape = (warped_sds, jax.ShapeDtypeStruct((B, 1, HW_pad), f32))
        out_specs = [warped_spec,
                     pl.BlockSpec((None, 1, tile), lambda b, t: (b, 0, t))]
    else:
        out_shape = warped_sds
        out_specs = warped_spec

    # Advisory cost estimate for the XLA scheduler.
    flops = int(B * HW_pad * (2 * C * r_dim * k_dim + 2 * C * r_dim + 40))
    bytes_accessed = int(B * (C * r_dim * k_dim * mm_bytes
                              + HW_pad * (4 + 8 + C * out_bytes
                                          + (4 if is_mask else 0))))
    cost = pl.CostEstimate(flops=flops, transcendentals=int(B * HW_pad),
                           bytes_accessed=bytes_accessed)

    # Megacore: split on batch when possible (splitting t would make both
    # cores fetch the same img block from HBM).
    dims = ("parallel", "arbitrary") if B >= 2 else ("arbitrary", "parallel")

    result = pl.pallas_call(
        kern,
        out_shape=out_shape,
        grid_spec=pltpu.PrefetchScalarGridSpec(
            num_scalar_prefetch=0,
            grid=(B, n_tiles),
            in_specs=in_specs,
            out_specs=out_specs,
        ),
        compiler_params=pltpu.CompilerParams(
            dimension_semantics=dims,
            vmem_limit_bytes=int(vmem_limit),
        ),
        cost_estimate=cost,
    )(pix, depth_f, inv_K3, P3, img2d)

    if is_mask:
        warped_f, mask_f = result
        mask = mask_f[:, :, :HW].reshape(B, 1, H, W)
    else:
        warped_f = result
        mask = None
    warped = warped_f[:, :, :HW].reshape(B, C, H, W)   # already in img.dtype
    return warped, mask


def _reference(depth, inv_K, T, K, img, is_mask):
    """Pure-JAX reference of DepthProjector.forward (f32 math)."""
    B, C, H, W = img.shape
    f32 = jnp.float32
    HW = H * W
    gxx, gyy = jnp.meshgrid(jnp.arange(W, dtype=f32),
                            jnp.arange(H, dtype=f32), indexing="xy")
    pix = jnp.stack([gxx.reshape(-1), gyy.reshape(-1),
                     jnp.ones(HW, f32)], axis=0)                  # (3, HW)
    cam = jnp.einsum('bij,jn->bin', inv_K[:, :3, :3].astype(f32), pix)
    cam = depth.reshape(B, 1, HW).astype(f32) * cam
    cam = jnp.concatenate([cam, jnp.ones((B, 1, HW), f32)], axis=1)
    P = jnp.matmul(K.astype(f32), T.astype(f32))[:, :3, :]
    proj = jnp.einsum('bij,bjn->bin', P, cam)
    px = proj[:, 0] / (proj[:, 2] + 1e-8)
    py = proj[:, 1] / (proj[:, 2] + 1e-8)
    ix = jnp.clip(px, 0.0, W - 1.0)
    iy = jnp.clip(py, 0.0, H - 1.0)
    x0 = jnp.floor(ix); y0 = jnp.floor(iy)
    wx = ix - x0; wy = iy - y0
    x0i = x0.astype(jnp.int32); y0i = y0.astype(jnp.int32)
    x1i = jnp.minimum(x0i + 1, W - 1); y1i = jnp.minimum(y0i + 1, H - 1)
    imgf = img.reshape(B, C, HW).astype(f32)

    def gather(yi, xi):
        idx = jnp.broadcast_to((yi * W + xi)[:, None, :], (B, C, HW))
        return jnp.take_along_axis(imgf, idx, axis=2)

    v00 = gather(y0i, x0i); v01 = gather(y0i, x1i)
    v10 = gather(y1i, x0i); v11 = gather(y1i, x1i)
    wxe = wx[:, None, :]; wye = wy[:, None, :]
    out = (v00 * (1 - wxe) * (1 - wye) + v01 * wxe * (1 - wye)
           + v10 * (1 - wxe) * wye + v11 * wxe * wye)
    warped = out.reshape(B, C, H, W)
    mask = None
    if is_mask:
        valid = ((px >= 0) & (px <= W - 1) & (py >= 0) & (py <= H - 1))
        mask = valid.astype(f32).reshape(B, 1, H, W)
    return warped, mask


if __name__ == "__main__":
    B, C, H, W = 2, 4, 16, 16

    key = jax.random.PRNGKey(0)
    k1, k2, k3 = jax.random.split(key, 3)

    depth = jax.random.uniform(k1, (B, 1, H, W), jnp.float32, 1.0, 5.0)
    img = jax.random.uniform(k2, (B, C, H, W), jnp.float32)

    fx = fy = W / 2.0
    cx = (W - 1) / 2.0
    cy = (H - 1) / 2.0
    K1 = jnp.array([[fx, 0.0, cx, 0.0],
                    [0.0, fy, cy, 0.0],
                    [0.0, 0.0, 1.0, 0.0],
                    [0.0, 0.0, 0.0, 1.0]], jnp.float32)
    Kmat = jnp.broadcast_to(K1, (B, 4, 4))
    inv_K = jnp.linalg.inv(Kmat)
    trans = 0.05 * jax.random.normal(k3, (B, 3), jnp.float32)
    Tmat = jnp.broadcast_to(jnp.eye(4, dtype=jnp.float32), (B, 4, 4))
    Tmat = Tmat.at[:, :3, 3].set(trans)

    # f32-matmul path with mask: check against the pure-JAX reference.
    warped, mask = depth_projector_forward(depth, inv_K, Tmat, Kmat, img,
                                           is_mask=True,
                                           matmul_dtype=jnp.float32)
    jax.block_until_ready(warped)
    jax.block_until_ready(mask)
    ref_w, ref_m = _reference(depth, inv_K, Tmat, Kmat, img, True)
    assert warped.shape == (B, C, H, W) and mask.shape == (B, 1, H, W)
    assert float(jnp.max(jnp.abs(warped.astype(jnp.float32) - ref_w))) < 1e-4
    assert float(jnp.max(jnp.abs(mask - ref_m))) < 1e-4

    # Default fast path (bf16 matmul inputs, f32 accumulation), no mask:
    # skips mask compute + writeback entirely.
    warped2, mask2 = depth_projector_forward(depth, inv_K, Tmat, Kmat, img,
                                             is_mask=False)
    jax.block_until_ready(warped2)
    assert mask2 is None and warped2.shape == (B, C, H, W)
    assert float(jnp.max(jnp.abs(warped2.astype(jnp.float32) - ref_w))) < 5e-2

    # Portrait, non-128-multiple spatial size: exercises the host-side
    # transpose (contract over H) and the padded lane-dense stripe path.
    Hs, Ws = 20, 12
    d2 = jax.random.uniform(k1, (B, 1, Hs, Ws), jnp.float32, 1.0, 5.0)
    i2 = jax.random.uniform(k2, (B, C, Hs, Ws), jnp.float32)
    K2 = jnp.array([[Ws / 2.0, 0.0, (Ws - 1) / 2.0, 0.0],
                    [0.0, Hs / 2.0, (Hs - 1) / 2.0, 0.0],
                    [0.0, 0.0, 1.0, 0.0],
                    [0.0, 0.0, 0.0, 1.0]], jnp.float32)
    K2 = jnp.broadcast_to(K2, (B, 4, 4))
    invK2 = jnp.linalg.inv(K2)
    w3, m3 = depth_projector_forward(d2, invK2, Tmat, K2, i2, is_mask=True,
                                     matmul_dtype=jnp.float32)
    jax.block_until_ready(w3)
    rw3, rm3 = _reference(d2, invK2, Tmat, K2, i2, True)
    assert w3.shape == (B, C, Hs, Ws) and m3.shape == (B, 1, Hs, Ws)
    assert float(jnp.max(jnp.abs(w3.astype(jnp.float32) - rw3))) < 1e-4

    print("KERNEL_OK")
</pallas_src>

<mosaic_0001>
module attributes {stable_mosaic.version = 11 : i64} {
  func.func @_depth_projector_kernel(%arg0: i32, %arg1: i32, %arg2: memref<2x256xf32, #tpu.memory_space<vmem>>, %arg3: memref<1x1x256xf32, #tpu.memory_space<vmem>>, %arg4: memref<2x3x3xf32, #tpu.memory_space<smem>>, %arg5: memref<2x3x4xf32, #tpu.memory_space<smem>>, %arg6: memref<1x64x16xf32, #tpu.memory_space<vmem>>, %arg7: memref<1x4x256xf32, #tpu.memory_space<vmem>>, %arg8: memref<1x1x256xf32, #tpu.memory_space<vmem>>) attributes {dimension_semantics = [#tpu.dimension_semantics<parallel>, #tpu.dimension_semantics<arbitrary>], iteration_bounds = array<i64: 2, 1>, scalar_prefetch = 0 : i64, scratch_operands = 0 : i64, tpu.core_type = #tpu.core_type<tc>, window_params = [{transform_indices = @transform_0, window_bounds = array<i64: 2, 256>}, {transform_indices = @transform_1, window_bounds = array<i64: 1, 1, 256>}, {transform_indices = @transform_2, window_bounds = array<i64: 2, 3, 3>}, {transform_indices = @transform_3, window_bounds = array<i64: 2, 3, 4>}, {transform_indices = @transform_4, window_bounds = array<i64: 1, 64, 16>}, {transform_indices = @transform_5, window_bounds = array<i64: 1, 4, 256>}, {transform_indices = @transform_6, window_bounds = array<i64: 1, 1, 256>}]} {
    %c0 = arith.constant 0 : index
    %c0_0 = arith.constant 0 : index
    %0 = vector.load %arg2[%c0, %c0_0] : memref<2x256xf32, #tpu.memory_space<vmem>>, vector<1x256xf32>
    %c1 = arith.constant 1 : index
    %c0_1 = arith.constant 0 : index
    %1 = vector.load %arg2[%c1, %c0_1] : memref<2x256xf32, #tpu.memory_space<vmem>>, vector<1x256xf32>
    %c0_2 = arith.constant 0 : index
    %c0_3 = arith.constant 0 : index
    %c0_4 = arith.constant 0 : index
    %2 = vector.load %arg3[%c0_2, %c0_3, %c0_4] : memref<1x1x256xf32, #tpu.memory_space<vmem>>, vector<1x1x256xf32>
    %3 = vector.shape_cast %2 : vector<1x1x256xf32> to vector<1x256xf32>
    %4 = arith.index_cast %arg0 : i32 to index
    %c0_5 = arith.constant 0 : index
    %c0_6 = arith.constant 0 : index
    %5 = memref.load %arg4[%4, %c0_5, %c0_6] : memref<2x3x3xf32, #tpu.memory_space<smem>>
    %6 = vector.broadcast %5 : f32 to vector<1x256xf32>
    %7 = arith.mulf %6, %0 : vector<1x256xf32>
    %8 = arith.index_cast %arg0 : i32 to index
    %c0_7 = arith.constant 0 : index
    %c1_8 = arith.constant 1 : index
    %9 = memref.load %arg4[%8, %c0_7, %c1_8] : memref<2x3x3xf32, #tpu.memory_space<smem>>
    %10 = vector.broadcast %9 : f32 to vector<1x256xf32>
    %11 = arith.mulf %10, %1 : vector<1x256xf32>
    %12 = arith.addf %7, %11 : vector<1x256xf32>
    %13 = arith.index_cast %arg0 : i32 to index
    %c0_9 = arith.constant 0 : index
    %c2 = arith.constant 2 : index
    %14 = memref.load %arg4[%13, %c0_9, %c2] : memref<2x3x3xf32, #tpu.memory_space<smem>>
    %15 = vector.broadcast %14 : f32 to vector<1x256xf32>
    %16 = arith.addf %12, %15 : vector<1x256xf32>
    %17 = arith.mulf %16, %3 : vector<1x256xf32>
    %18 = arith.index_cast %arg0 : i32 to index
    %c1_10 = arith.constant 1 : index
    %c0_11 = arith.constant 0 : index
    %19 = memref.load %arg4[%18, %c1_10, %c0_11] : memref<2x3x3xf32, #tpu.memory_space<smem>>
    %20 = vector.broadcast %19 : f32 to vector<1x256xf32>
    %21 = arith.mulf %20, %0 : vector<1x256xf32>
    %22 = arith.index_cast %arg0 : i32 to index
    %c1_12 = arith.constant 1 : index
    %c1_13 = arith.constant 1 : index
    %23 = memref.load %arg4[%22, %c1_12, %c1_13] : memref<2x3x3xf32, #tpu.memory_space<smem>>
    %24 = vector.broadcast %23 : f32 to vector<1x256xf32>
    %25 = arith.mulf %24, %1 : vector<1x256xf32>
    %26 = arith.addf %21, %25 : vector<1x256xf32>
    %27 = arith.index_cast %arg0 : i32 to index
    %c1_14 = arith.constant 1 : index
    %c2_15 = arith.constant 2 : index
    %28 = memref.load %arg4[%27, %c1_14, %c2_15] : memref<2x3x3xf32, #tpu.memory_space<smem>>
    %29 = vector.broadcast %28 : f32 to vector<1x256xf32>
    %30 = arith.addf %26, %29 : vector<1x256xf32>
    %31 = arith.mulf %30, %3 : vector<1x256xf32>
    %32 = arith.index_cast %arg0 : i32 to index
    %c2_16 = arith.constant 2 : index
    %c0_17 = arith.constant 0 : index
    %33 = memref.load %arg4[%32, %c2_16, %c0_17] : memref<2x3x3xf32, #tpu.memory_space<smem>>
    %34 = vector.broadcast %33 : f32 to vector<1x256xf32>
    %35 = arith.mulf %34, %0 : vector<1x256xf32>
    %36 = arith.index_cast %arg0 : i32 to index
    %c2_18 = arith.constant 2 : index
    %c1_19 = arith.constant 1 : index
    %37 = memref.load %arg4[%36, %c2_18, %c1_19] : memref<2x3x3xf32, #tpu.memory_space<smem>>
    %38 = vector.broadcast %37 : f32 to vector<1x256xf32>
    %39 = arith.mulf %38, %1 : vector<1x256xf32>
    %40 = arith.addf %35, %39 : vector<1x256xf32>
    %41 = arith.index_cast %arg0 : i32 to index
    %c2_20 = arith.constant 2 : index
    %c2_21 = arith.constant 2 : index
    %42 = memref.load %arg4[%41, %c2_20, %c2_21] : memref<2x3x3xf32, #tpu.memory_space<smem>>
    %43 = vector.broadcast %42 : f32 to vector<1x256xf32>
    %44 = arith.addf %40, %43 : vector<1x256xf32>
    %45 = arith.mulf %44, %3 : vector<1x256xf32>
    %46 = arith.index_cast %arg0 : i32 to index
    %c0_22 = arith.constant 0 : index
    %c0_23 = arith.constant 0 : index
    %47 = memref.load %arg5[%46, %c0_22, %c0_23] : memref<2x3x4xf32, #tpu.memory_space<smem>>
    %48 = vector.broadcast %47 : f32 to vector<1x256xf32>
    %49 = arith.mulf %48, %17 : vector<1x256xf32>
    %50 = arith.index_cast %arg0 : i32 to index
    %c0_24 = arith.constant 0 : index
    %c1_25 = arith.constant 1 : index
    %51 = memref.load %arg5[%50, %c0_24, %c1_25] : memref<2x3x4xf32, #tpu.memory_space<smem>>
    %52 = vector.broadcast %51 : f32 to vector<1x256xf32>
    %53 = arith.mulf %52, %31 : vector<1x256xf32>
    %54 = arith.addf %49, %53 : vector<1x256xf32>
    %55 = arith.index_cast %arg0 : i32 to index
    %c0_26 = arith.constant 0 : index
    %c2_27 = arith.constant 2 : index
    %56 = memref.load %arg5[%55, %c0_26, %c2_27] : memref<2x3x4xf32, #tpu.memory_space<smem>>
    %57 = vector.broadcast %56 : f32 to vector<1x256xf32>
    %58 = arith.mulf %57, %45 : vector<1x256xf32>
    %59 = arith.addf %54, %58 : vector<1x256xf32>
    %60 = arith.index_cast %arg0 : i32 to index
    %c0_28 = arith.constant 0 : index
    %c3 = arith.constant 3 : index
    %61 = memref.load %arg5[%60, %c0_28, %c3] : memref<2x3x4xf32, #tpu.memory_space<smem>>
    %62 = vector.broadcast %61 : f32 to vector<1x256xf32>
    %63 = arith.addf %59, %62 : vector<1x256xf32>
    %64 = arith.index_cast %arg0 : i32 to index
    %c1_29 = arith.constant 1 : index
    %c0_30 = arith.constant 0 : index
    %65 = memref.load %arg5[%64, %c1_29, %c0_30] : memref<2x3x4xf32, #tpu.memory_space<smem>>
    %66 = vector.broadcast %65 : f32 to vector<1x256xf32>
    %67 = arith.mulf %66, %17 : vector<1x256xf32>
    %68 = arith.index_cast %arg0 : i32 to index
    %c1_31 = arith.constant 1 : index
    %c1_32 = arith.constant 1 : index
    %69 = memref.load %arg5[%68, %c1_31, %c1_32] : memref<2x3x4xf32, #tpu.memory_space<smem>>
    %70 = vector.broadcast %69 : f32 to vector<1x256xf32>
    %71 = arith.mulf %70, %31 : vector<1x256xf32>
    %72 = arith.addf %67, %71 : vector<1x256xf32>
    %73 = arith.index_cast %arg0 : i32 to index
    %c1_33 = arith.constant 1 : index
    %c2_34 = arith.constant 2 : index
    %74 = memref.load %arg5[%73, %c1_33, %c2_34] : memref<2x3x4xf32, #tpu.memory_space<smem>>
    %75 = vector.broadcast %74 : f32 to vector<1x256xf32>
    %76 = arith.mulf %75, %45 : vector<1x256xf32>
    %77 = arith.addf %72, %76 : vector<1x256xf32>
    %78 = arith.index_cast %arg0 : i32 to index
    %c1_35 = arith.constant 1 : index
    %c3_36 = arith.constant 3 : index
    %79 = memref.load %arg5[%78, %c1_35, %c3_36] : memref<2x3x4xf32, #tpu.memory_space<smem>>
    %80 = vector.broadcast %79 : f32 to vector<1x256xf32>
    %81 = arith.addf %77, %80 : vector<1x256xf32>
    %82 = arith.index_cast %arg0 : i32 to index
    %c2_37 = arith.constant 2 : index
    %c0_38 = arith.constant 0 : index
    %83 = memref.load %arg5[%82, %c2_37, %c0_38] : memref<2x3x4xf32, #tpu.memory_space<smem>>
    %84 = vector.broadcast %83 : f32 to vector<1x256xf32>
    %85 = arith.mulf %84, %17 : vector<1x256xf32>
    %86 = arith.index_cast %arg0 : i32 to index
    %c2_39 = arith.constant 2 : index
    %c1_40 = arith.constant 1 : index
    %87 = memref.load %arg5[%86, %c2_39, %c1_40] : memref<2x3x4xf32, #tpu.memory_space<smem>>
    %88 = vector.broadcast %87 : f32 to vector<1x256xf32>
    %89 = arith.mulf %88, %31 : vector<1x256xf32>
    %90 = arith.addf %85, %89 : vector<1x256xf32>
    %91 = arith.index_cast %arg0 : i32 to index
    %c2_41 = arith.constant 2 : index
    %c2_42 = arith.constant 2 : index
    %92 = memref.load %arg5[%91, %c2_41, %c2_42] : memref<2x3x4xf32, #tpu.memory_space<smem>>
    %93 = vector.broadcast %92 : f32 to vector<1x256xf32>
    %94 = arith.mulf %93, %45 : vector<1x256xf32>
    %95 = arith.addf %90, %94 : vector<1x256xf32>
    %96 = arith.index_cast %arg0 : i32 to index
    %c2_43 = arith.constant 2 : index
    %c3_44 = arith.constant 3 : index
    %97 = memref.load %arg5[%96, %c2_43, %c3_44] : memref<2x3x4xf32, #tpu.memory_space<smem>>
    %98 = vector.broadcast %97 : f32 to vector<1x256xf32>
    %99 = arith.addf %95, %98 : vector<1x256xf32>
    %cst = arith.constant 9.99999993E-9 : f32
    %100 = vector.broadcast %cst : f32 to vector<1x256xf32>
    %101 = arith.addf %99, %100 : vector<1x256xf32>
    %102 = tpu.reciprocal %101 : vector<1x256xf32> -> vector<1x256xf32>
    %103 = arith.mulf %63, %102 : vector<1x256xf32>
    %104 = arith.mulf %81, %102 : vector<1x256xf32>
    %cst_45 = arith.constant 0.000000e+00 : f32
    %cst_46 = arith.constant 1.500000e+01 : f32
    %105 = vector.broadcast %cst_45 : f32 to vector<1x256xf32>
    %106 = arith.maximumf %105, %103 : vector<1x256xf32>
    %107 = vector.broadcast %cst_46 : f32 to vector<1x256xf32>
    %108 = arith.minimumf %107, %106 : vector<1x256xf32>
    %cst_47 = arith.constant 0.000000e+00 : f32
    %cst_48 = arith.constant 1.500000e+01 : f32
    %109 = vector.broadcast %cst_47 : f32 to vector<1x256xf32>
    %110 = arith.maximumf %109, %104 : vector<1x256xf32>
    %111 = vector.broadcast %cst_48 : f32 to vector<1x256xf32>
    %112 = arith.minimumf %111, %110 : vector<1x256xf32>
    %113 = arith.fptosi %108 : vector<1x256xf32> to vector<1x256xi32>
    %114 = arith.fptosi %112 : vector<1x256xf32> to vector<1x256xi32>
    %115 = arith.sitofp %113 : vector<1x256xi32> to vector<1x256xf32>
    %116 = arith.subf %108, %115 : vector<1x256xf32>
    %117 = arith.sitofp %114 : vector<1x256xi32> to vector<1x256xf32>
    %118 = arith.subf %112, %117 : vector<1x256xf32>
    %c1_i32 = arith.constant 1 : i32
    %119 = vector.broadcast %c1_i32 : i32 to vector<1x256xi32>
    %120 = arith.addi %113, %119 : vector<1x256xi32>
    %c15_i32 = arith.constant 15 : i32
    %121 = vector.broadcast %c15_i32 : i32 to vector<1x256xi32>
    %122 = arith.minsi %120, %121 : vector<1x256xi32>
    %c1_i32_49 = arith.constant 1 : i32
    %123 = vector.broadcast %c1_i32_49 : i32 to vector<1x256xi32>
    %124 = arith.addi %114, %123 : vector<1x256xi32>
    %c15_i32_50 = arith.constant 15 : i32
    %125 = vector.broadcast %c15_i32_50 : i32 to vector<1x256xi32>
    %126 = arith.minsi %124, %125 : vector<1x256xi32>
    %127 = tpu.iota {dimensions = array<i32: 0>} : vector<16x256xi32>
    %cst_51 = arith.constant 1.000000e+00 : f32
    %128 = vector.broadcast %cst_51 : f32 to vector<1x256xf32>
    %129 = arith.subf %128, %116 : vector<1x256xf32>
    %130 = vector.broadcast %113 : vector<1x256xi32> to vector<16x256xi32>
    %131 = arith.cmpi eq, %127, %130 : vector<16x256xi32>
    %cst_52 = arith.constant 0.000000e+00 : f32
    %132 = vector.shape_cast %129 : vector<1x256xf32> to vector<1x256xf32>
    %133 = vector.broadcast %132 : vector<1x256xf32> to vector<16x256xf32>
    %134 = vector.broadcast %cst_52 : f32 to vector<16x256xf32>
    %135 = arith.select %131, %133, %134 : vector<16x256xi1>, vector<16x256xf32>
    %136 = vector.broadcast %122 : vector<1x256xi32> to vector<16x256xi32>
    %137 = arith.cmpi eq, %127, %136 : vector<16x256xi32>
    %cst_53 = arith.constant 0.000000e+00 : f32
    %138 = vector.shape_cast %116 : vector<1x256xf32> to vector<1x256xf32>
    %139 = vector.broadcast %138 : vector<1x256xf32> to vector<16x256xf32>
    %140 = vector.broadcast %cst_53 : f32 to vector<16x256xf32>
    %141 = arith.select %137, %139, %140 : vector<16x256xi1>, vector<16x256xf32>
    %142 = arith.addf %135, %141 : vector<16x256xf32>
    %143 = tpu.iota {dimensions = array<i32: 0>} : vector<16x256xi32>
    %cst_54 = arith.constant 1.000000e+00 : f32
    %144 = vector.broadcast %cst_54 : f32 to vector<1x256xf32>
    %145 = arith.subf %144, %118 : vector<1x256xf32>
    %146 = vector.broadcast %114 : vector<1x256xi32> to vector<16x256xi32>
    %147 = arith.cmpi eq, %143, %146 : vector<16x256xi32>
    %cst_55 = arith.constant 0.000000e+00 : f32
    %148 = vector.shape_cast %145 : vector<1x256xf32> to vector<1x256xf32>
    %149 = vector.broadcast %148 : vector<1x256xf32> to vector<16x256xf32>
    %150 = vector.broadcast %cst_55 : f32 to vector<16x256xf32>
    %151 = arith.select %147, %149, %150 : vector<16x256xi1>, vector<16x256xf32>
    %152 = vector.broadcast %126 : vector<1x256xi32> to vector<16x256xi32>
    %153 = arith.cmpi eq, %143, %152 : vector<16x256xi32>
    %cst_56 = arith.constant 0.000000e+00 : f32
    %154 = vector.shape_cast %118 : vector<1x256xf32> to vector<1x256xf32>
    %155 = vector.broadcast %154 : vector<1x256xf32> to vector<16x256xf32>
    %156 = vector.broadcast %cst_56 : f32 to vector<16x256xf32>
    %157 = arith.select %153, %155, %156 : vector<16x256xi1>, vector<16x256xf32>
    %158 = arith.addf %151, %157 : vector<16x256xf32>
    %c0_57 = arith.constant 0 : index
    %c0_58 = arith.constant 0 : index
    %c0_59 = arith.constant 0 : index
    %159 = vector.load %arg6[%c0_57, %c0_58, %c0_59] : memref<1x64x16xf32, #tpu.memory_space<vmem>>, vector<1x64x16xf32>
    %160 = vector.shape_cast %159 : vector<1x64x16xf32> to vector<64x16xf32>
    %cst_60 = arith.constant dense<0.000000e+00> : vector<64x256xf32>
    %161 = tpu.matmul %160, %142, %cst_60 {dimension_numbers = #tpu.dot_dimension_numbers<[1], [0], [0], [1], [0, 0, 1, 1], [], []>} : vector<64x16xf32>, vector<16x256xf32>, vector<64x256xf32> -> vector<64x256xf32>
    %162 = vector.extract_strided_slice %161 {offsets = [0, 0], sizes = [16, 256], strides = [1, 1]} : vector<64x256xf32> to vector<16x256xf32>
    %163 = arith.mulf %162, %158 : vector<16x256xf32>
    %cst_61 = arith.constant dense<0.000000e+00> : vector<256xf32>
    %164 = vector.multi_reduction <add>, %163, %cst_61 [0] : vector<16x256xf32> to vector<256xf32>
    %165 = vector.shape_cast %164 : vector<256xf32> to vector<1x256xf32>
    %166 = vector.extract_strided_slice %161 {offsets = [16, 0], sizes = [16, 256], strides = [1, 1]} : vector<64x256xf32> to vector<16x256xf32>
    %167 = arith.mulf %166, %158 : vector<16x256xf32>
    %cst_62 = arith.constant dense<0.000000e+00> : vector<256xf32>
    %168 = vector.multi_reduction <add>, %167, %cst_62 [0] : vector<16x256xf32> to vector<256xf32>
    %169 = vector.shape_cast %168 : vector<256xf32> to vector<1x256xf32>
    %170 = vector.extract_strided_slice %161 {offsets = [32, 0], sizes = [16, 256], strides = [1, 1]} : vector<64x256xf32> to vector<16x256xf32>
    %171 = arith.mulf %170, %158 : vector<16x256xf32>
    %cst_63 = arith.constant dense<0.000000e+00> : vector<256xf32>
    %172 = vector.multi_reduction <add>, %171, %cst_63 [0] : vector<16x256xf32> to vector<256xf32>
    %173 = vector.shape_cast %172 : vector<256xf32> to vector<1x256xf32>
    %174 = vector.extract_strided_slice %161 {offsets = [48, 0], sizes = [16, 256], strides = [1, 1]} : vector<64x256xf32> to vector<16x256xf32>
    %175 = arith.mulf %174, %158 : vector<16x256xf32>
    %cst_64 = arith.constant dense<0.000000e+00> : vector<256xf32>
    %176 = vector.multi_reduction <add>, %175, %cst_64 [0] : vector<16x256xf32> to vector<256xf32>
    %177 = vector.shape_cast %176 : vector<256xf32> to vector<1x256xf32>
    %178 = tpu.concatenate %165, %169, %173, %177 in 0 : vector<1x256xf32>, vector<1x256xf32>, vector<1x256xf32>, vector<1x256xf32> -> vector<4x256xf32>
    %c0_65 = arith.constant 0 : index
    %c0_66 = arith.constant 0 : index
    %c0_67 = arith.constant 0 : index
    %179 = vector.load %arg7[%c0_65, %c0_66, %c0_67] : memref<1x4x256xf32, #tpu.memory_space<vmem>>, vector<1x4x256xf32>
    %180 = vector.shape_cast %179 : vector<1x4x256xf32> to vector<4x256xf32>
    %181 = vector.shape_cast %178 : vector<4x256xf32> to vector<1x4x256xf32>
    tpu.vector_store %arg7[%c0_65, %c0_66, %c0_67], %181 {strides = array<i32>} : memref<1x4x256xf32, #tpu.memory_space<vmem>>, vector<1x4x256xf32>,
    %cst_68 = arith.constant 0.000000e+00 : f32
    %182 = vector.broadcast %cst_68 : f32 to vector<1x256xf32>
    %183 = arith.cmpf oge, %103, %182 : vector<1x256xf32>
    %cst_69 = arith.constant 1.500000e+01 : f32
    %184 = vector.broadcast %cst_69 : f32 to vector<1x256xf32>
    %185 = arith.cmpf ole, %103, %184 : vector<1x256xf32>
    %186 = arith.andi %183, %185 : vector<1x256xi1>
    %cst_70 = arith.constant 0.000000e+00 : f32
    %187 = vector.broadcast %cst_70 : f32 to vector<1x256xf32>
    %188 = arith.cmpf oge, %104, %187 : vector<1x256xf32>
    %189 = arith.andi %186, %188 : vector<1x256xi1>
    %cst_71 = arith.constant 1.500000e+01 : f32
    %190 = vector.broadcast %cst_71 : f32 to vector<1x256xf32>
    %191 = arith.cmpf ole, %104, %190 : vector<1x256xf32>
    %192 = arith.andi %189, %191 : vector<1x256xi1>
    %193 = arith.extui %192 : vector<1x256xi1> to vector<1x256xi32>
    %194 = arith.sitofp %193 : vector<1x256xi32> to vector<1x256xf32>
    %c0_72 = arith.constant 0 : index
    %c0_73 = arith.constant 0 : index
    %c0_74 = arith.constant 0 : index
    %195 = vector.load %arg8[%c0_72, %c0_73, %c0_74] : memref<1x1x256xf32, #tpu.memory_space<vmem>>, vector<1x1x256xf32>
    %196 = vector.shape_cast %195 : vector<1x1x256xf32> to vector<1x256xf32>
    %197 = vector.shape_cast %194 : vector<1x256xf32> to vector<1x1x256xf32>
    tpu.vector_store %arg8[%c0_72, %c0_73, %c0_74], %197 {strides = array<i32>} : memref<1x1x256xf32, #tpu.memory_space<vmem>>, vector<1x1x256xf32>,
    return
  }
  func.func @transform_0(%arg0: i32, %arg1: i32) -> (i32, i32) {
    %c0_i32 = arith.constant 0 : i32
    %c0_i32_0 = arith.constant 0 : i32
    return %c0_i32, %arg1 : i32, i32
  }
  func.func @transform_1(%arg0: i32, %arg1: i32) -> (i32, i32, i32) {
    %c0_i32 = arith.constant 0 : i32
    %c0_i32_0 = arith.constant 0 : i32
    return %arg0, %c0_i32, %arg1 : i32, i32, i32
  }
  func.func @transform_2(%arg0: i32, %arg1: i32) -> (i32, i32, i32) {
    %c0_i32 = arith.constant 0 : i32
    %c0_i32_0 = arith.constant 0 : i32
    %c0_i32_1 = arith.constant 0 : i32
    %c0_i32_2 = arith.constant 0 : i32
    return %c0_i32, %c0_i32_0, %c0_i32_1 : i32, i32, i32
  }
  func.func @transform_3(%arg0: i32, %arg1: i32) -> (i32, i32, i32) {
    %c0_i32 = arith.constant 0 : i32
    %c0_i32_0 = arith.constant 0 : i32
    %c0_i32_1 = arith.constant 0 : i32
    %c0_i32_2 = arith.constant 0 : i32
    return %c0_i32, %c0_i32_0, %c0_i32_1 : i32, i32, i32
  }
  func.func @transform_4(%arg0: i32, %arg1: i32) -> (i32, i32, i32) {
    %c0_i32 = arith.constant 0 : i32
    %c0_i32_0 = arith.constant 0 : i32
    %c0_i32_1 = arith.constant 0 : i32
    return %arg0, %c0_i32, %c0_i32_0 : i32, i32, i32
  }
  func.func @transform_5(%arg0: i32, %arg1: i32) -> (i32, i32, i32) {
    %c0_i32 = arith.constant 0 : i32
    %c0_i32_0 = arith.constant 0 : i32
    return %arg0, %c0_i32, %arg1 : i32, i32, i32
  }
  func.func @transform_6(%arg0: i32, %arg1: i32) -> (i32, i32, i32) {
    %c0_i32 = arith.constant 0 : i32
    %c0_i32_0 = arith.constant 0 : i32
    return %arg0, %c0_i32, %arg1 : i32, i32, i32
  }
}

</mosaic_0001>

<llo_original>
// kernel: tpu_custom_call.1
$region0: #{tpu_custom_call.1}
  #allocation0 [shape = 'u32[]', space=smem, size = 0x4, offset = 0x4, fixed_abs, tag = 'smem constant byte address 0x4 - core index']
  #allocation1 [shape = 'u32[72,128]{1,0:T(1,128)}', space=vmem, size = 0x9000, scoped, tag = 'internal scratch']
  %s0 = inlined_call_operand.vmem [shape: f32[2,256], index: 0, kind: input, shape index: {}]
  %s1 = inlined_call_operand.vmem [shape: f32[2,1,256], index: 1, kind: input, shape index: {}]
  %s2 = inlined_call_operand.vmem [shape: f32[2,3,3], index: 2, kind: input, shape index: {}]
  %s3 = inlined_call_operand.vmem [shape: f32[2,3,4], index: 3, kind: input, shape index: {}]
  %s4 = inlined_call_operand.vmem [shape: f32[2,64,16], index: 4, kind: input, shape index: {}]
  %s5 = inlined_call_operand.hbm [shape: f32[2,4,256], index: 5, kind: output, shape index: {0}]
  %s6 = inlined_call_operand.hbm [shape: f32[2,1,256], index: 6, kind: output, shape index: {1}]
  %7 = xla_tuple %s5, %s6
  %s8 = sld [smem:[#allocation0]]
  $region69: #{tpu_custom_call.1} parent=0
    _
  %s10 = ssub.s32 1, %s8
  %s11 = scalar_select 0, %s10, %s8
  $region1: #{tpu_custom_call.1} parent=0
    #allocation2 [shape = 'u8[4096]{0}', space=smem, size = 0x1000, scoped, tag = 'input window, operand 2, single buffered']
    #allocation3 [shape = 's32[2]{0}', space=sflag, size = 0x8, scoped, tag = 'scoped memory for tpu_custom_call.1']
    #allocation4 [shape = 's32[2]{0}', space=sflag, size = 0x8, scoped, tag = 'scoped memory for tpu_custom_call.1']
    #allocation5 [shape = 'u8[4096]{0}', space=smem, size = 0x1000, scoped, tag = 'input window, operand 3, single buffered']
    #allocation6 [shape = 's32[1]{0}', space=sflag, size = 0x4, scoped, tag = 'scoped memory for tpu_custom_call.1']
    #allocation7 [shape = 'u8[8192]{0}', space=vmem, size = 0x2000, scoped, tag = 'output window, operand 0']
    #allocation8 [shape = 'u8[2048]{0}', space=vmem, size = 0x800, scoped, tag = 'output window, operand 1']
    #allocation9 [shape = 's32[2]{0}', space=sflag, size = 0x8, scoped, tag = 'scoped memory for tpu_custom_call.1']
    %12 = vsyncpa [#allocation4], 0
    %13 = vsyncpa [#allocation6], 0
    %14 = vsyncpa [#allocation3], 0
    %s15 = scalar_lea.sflag [#allocation3], 1
    %16 = vsyncpa %s15, 0
    %17 = vsyncpa [#allocation9], 0
    %s18 = scalar_lea.sflag [#allocation9], 1
    %19 = vsyncpa %s18, 0
    loop: start=0, step=1, limit=4
    $region2: #{tpu_custom_call.1} parent=1 // loop_pre_header
      _
    $region3: #{tpu_custom_call.1} parent=1 // loop_header
      %s21 = sphi 0, %s25
      %p22 = scmp.ge.s32.totalorder %s21, 4
      %s28 = sphi 0, %s40
      %s29 = sphi 0, %s36
      %s30 = sphi 0, %s28
      %s31 = sphi 0, %s29
      %s32 = sphi 0, %s30
      %s33 = sphi 0, %s31
      %s43 = sphi 0, %s45
      %s46 = sphi 0, %s43
      %s47 = sphi 0, %s46
      %s63 = sphi 0, %s47
      %s71 = sphi 0, %s73
      %s74 = sphi 0, %s71
      %s75 = sphi 0, %s74
      %s91 = sphi 0, %s75
      %s95 = sphi 0, %s95
      %s97 = sphi 0, %s95
      %s98 = sphi 0, %s97
      %s112 = sphi 0, %s98
      %s116 = sphi 0, %s116
      %s118 = sphi 0, %s116
      %s119 = sphi 0, %s118
      %s133 = sphi 0, %s119
      %s139 = sphi 0, %s141
      %s142 = sphi 0, %s139
      %s143 = sphi 0, %s142
      %s159 = sphi 0, %s143
      %s167 = sphi 0, %s169
      %s170 = sphi 0, %s167
      %s171 = sphi 0, %s170
      %s187 = sphi 0, %s171
      %s195 = sphi 0, %s197
      %s198 = sphi 0, %s195
      %s199 = sphi 0, %s198
      %s215 = sphi 0, %s199
    $region4: #{tpu_custom_call.1} parent=1 // loop_header_branch
      %24 = sbr.rel (%p22) target = $region8
    $region5: #{tpu_custom_call.1} parent=1 // loop_body
      %s26 = ssub.s32 %s21, 1
      %s27 = ssub.s32 %s21, 2
      %s34 = sadd.s32 1, %s29
      %p35 = scmp.ge.s32.totalorder %s34, 1
      %s36 = scalar_select %p35, 0, %s34
      %s37 = sadd.s32 1, %s28
      %s38 = scalar_select %p35, %s37, %s28
      %p39 = scmp.ge.s32.totalorder %s38, 2
      %s40 = scalar_select %p39, 0, %s38
      %s41 = ssub.s32 %s29, %s36
      %p42 = scmp.eq.s32.totalorder %s41, 0
      %s44 = sadd.s32 %s43, 1
      %s45 = scalar_select %p42, %s43, %s44
      %p48 = pneg %p42
      %p49 = scmp.eq.s32.totalorder %s21, 1
      %p50 = por %p48, %p49
      %p51 = scmp.ne.s32.totalorder %s43, %s46
      %p52 = scmp.eq.s32.totalorder %s21, 0
      %p53 = por %p51, %p52
      %p54 = scmp.ne.s32.totalorder %s43, %s46
      %p55 = scmp.eq.s32.totalorder %s26, 1
      %p56 = por %p54, %p55
      %p57 = scmp.ne.s32.totalorder %s46, %s47
      %p58 = scmp.eq.s32.totalorder %s26, 0
      %p59 = por %p57, %p58
      %p60 = scmp.ne.s32.totalorder %s46, %s47
      %p61 = scmp.eq.s32.totalorder %s27, 1
      %p62 = por %p60, %p61
      %p64 = scmp.ne.s32.totalorder %s47, %s63
      %p65 = scmp.eq.s32.totalorder %s27, 0
      %p66 = por %p64, %p65
      %s67 = ssub.s32 %s28, %s40
      %s68 = ssub.s32 %s29, %s36
      %s69 = sor.u32 %s67, %s68
      %p70 = scmp.eq.s32.totalorder %s69, 0
      %s72 = sadd.s32 %s71, 1
      %s73 = scalar_select %p70, %s71, %s72
      %p76 = pneg %p70
      %p77 = scmp.eq.s32.totalorder %s21, 1
      %p78 = por %p76, %p77
      %p79 = scmp.ne.s32.totalorder %s71, %s74
      %p80 = scmp.eq.s32.totalorder %s21, 0
      %p81 = por %p79, %p80
      %p82 = scmp.ne.s32.totalorder %s71, %s74
      %p83 = scmp.eq.s32.totalorder %s26, 1
      %p84 = por %p82, %p83
      %p85 = scmp.ne.s32.totalorder %s74, %s75
      %p86 = scmp.eq.s32.totalorder %s26, 0
      %p87 = por %p85, %p86
      %p88 = scmp.ne.s32.totalorder %s74, %s75
      %p89 = scmp.eq.s32.totalorder %s27, 1
      %p90 = por %p88, %p89
      %p92 = scmp.ne.s32.totalorder %s75, %s91
      %p93 = scmp.eq.s32.totalorder %s27, 0
      %p94 = por %p92, %p93
      %s96 = sadd.s32 %s95, 1
      %p99 = scmp.eq.s32.totalorder %s21, 1
      %p100 = scmp.ne.s32.totalorder %s95, %s97
      %p101 = scmp.eq.s32.totalorder %s21, 0
      %p102 = por %p100, %p101
      %p103 = scmp.ne.s32.totalorder %s95, %s97
      %p104 = scmp.eq.s32.totalorder %s26, 1
      %p105 = por %p103, %p104
      %p106 = scmp.ne.s32.totalorder %s97, %s98
      %p107 = scmp.eq.s32.totalorder %s26, 0
      %p108 = por %p106, %p107
      %p109 = scmp.ne.s32.totalorder %s97, %s98
      %p110 = scmp.eq.s32.totalorder %s27, 1
      %p111 = por %p109, %p110
      %p113 = scmp.ne.s32.totalorder %s98, %s112
      %p114 = scmp.eq.s32.totalorder %s27, 0
      %p115 = por %p113, %p114
      %s117 = sadd.s32 %s116, 1
      %p120 = scmp.eq.s32.totalorder %s21, 1
      %p121 = scmp.ne.s32.totalorder %s116, %s118
      %p122 = scmp.eq.s32.totalorder %s21, 0
      %p123 = por %p121, %p122
      %p124 = scmp.ne.s32.totalorder %s116, %s118
      %p125 = scmp.eq.s32.totalorder %s26, 1
      %p126 = por %p124, %p125
      %p127 = scmp.ne.s32.totalorder %s118, %s119
      %p128 = scmp.eq.s32.totalorder %s26, 0
      %p129 = por %p127, %p128
      %p130 = scmp.ne.s32.totalorder %s118, %s119
      %p131 = scmp.eq.s32.totalorder %s27, 1
      %p132 = por %p130, %p131
      %p134 = scmp.ne.s32.totalorder %s119, %s133
      %p135 = scmp.eq.s32.totalorder %s27, 0
      %p136 = por %p134, %p135
      %s137 = ssub.s32 %s28, %s40
      %p138 = scmp.eq.s32.totalorder %s137, 0
      %s140 = sadd.s32 %s139, 1
      %s141 = scalar_select %p138, %s139, %s140
      %p144 = pneg %p138
      %p145 = scmp.eq.s32.totalorder %s21, 1
      %p146 = por %p144, %p145
      %p147 = scmp.ne.s32.totalorder %s139, %s142
      %p148 = scmp.eq.s32.totalorder %s21, 0
      %p149 = por %p147, %p148
      %p150 = scmp.ne.s32.totalorder %s139, %s142
      %p151 = scmp.eq.s32.totalorder %s26, 1
      %p152 = por %p150, %p151
      %p153 = scmp.ne.s32.totalorder %s142, %s143
      %p154 = scmp.eq.s32.totalorder %s26, 0
      %p155 = por %p153, %p154
      %p156 = scmp.ne.s32.totalorder %s142, %s143
      %p157 = scmp.eq.s32.totalorder %s27, 1
      %p158 = por %p156, %p157
      %p160 = scmp.ne.s32.totalorder %s143, %s159
      %p161 = scmp.eq.s32.totalorder %s27, 0
      %p162 = por %p160, %p161
      %s163 = ssub.s32 %s28, %s40
      %s164 = ssub.s32 %s29, %s36
      %s165 = sor.u32 %s163, %s164
      %p166 = scmp.eq.s32.totalorder %s165, 0
      %s168 = sadd.s32 %s167, 1
      %s169 = scalar_select %p166, %s167, %s168
      %p172 = pneg %p166
      %p173 = scmp.eq.s32.totalorder %s21, 1
      %p174 = por %p172, %p173
      %p175 = scmp.ne.s32.totalorder %s167, %s170
      %p176 = scmp.eq.s32.totalorder %s21, 0
      %p177 = por %p175, %p176
      %p178 = scmp.ne.s32.totalorder %s167, %s170
      %p179 = scmp.eq.s32.totalorder %s26, 1
      %p180 = por %p178, %p179
      %p181 = scmp.ne.s32.totalorder %s170, %s171
      %p182 = scmp.eq.s32.totalorder %s26, 0
      %p183 = por %p181, %p182
      %p184 = scmp.ne.s32.totalorder %s170, %s171
      %p185 = scmp.eq.s32.totalorder %s27, 1
      %p186 = por %p184, %p185
      %p188 = scmp.ne.s32.totalorder %s171, %s187
      %p189 = scmp.eq.s32.totalorder %s27, 0
      %p190 = por %p188, %p189
      %s191 = ssub.s32 %s28, %s40
      %s192 = ssub.s32 %s29, %s36
      %s193 = sor.u32 %s191, %s192
      %p194 = scmp.eq.s32.totalorder %s193, 0
      %s196 = sadd.s32 %s195, 1
      %s197 = scalar_select %p194, %s195, %s196
      %p200 = pneg %p194
      %p201 = scmp.eq.s32.totalorder %s21, 1
      %p202 = por %p200, %p201
      %p203 = scmp.ne.s32.totalorder %s195, %s198
      %p204 = scmp.eq.s32.totalorder %s21, 0
      %p205 = por %p203, %p204
      %p206 = scmp.ne.s32.totalorder %s195, %s198
      %p207 = scmp.eq.s32.totalorder %s26, 1
      %p208 = por %p206, %p207
      %p209 = scmp.ne.s32.totalorder %s198, %s199
      %p210 = scmp.eq.s32.totalorder %s26, 0
      %p211 = por %p209, %p210
      %p212 = scmp.ne.s32.totalorder %s198, %s199
      %p213 = scmp.eq.s32.totalorder %s27, 1
      %p214 = por %p212, %p213
      %p216 = scmp.ne.s32.totalorder %s199, %s215
      %p217 = scmp.eq.s32.totalorder %s27, 0
      %p218 = por %p216, %p217
      %p219 = scmp.le.s32.totalorder 1, %s21
      %p220 = scmp.lt.s32.totalorder %s21, 3
      %p221 = pnand %p219, %p220
      %p222 = pneg %p221
      // Predicated region
      $region9: #{tpu_custom_call.1} parent=5 // pred_check
        _
      $region10: #{tpu_custom_call.1} parent=5 // pred_check_branch
        %224 = sbr.rel (%p221) target = $region12
      $region11: #{tpu_custom_call.1} parent=5 // pred_region
        %s225 = ssub.s32 %s21, 1
        // Predicated region
        $region13: #{tpu_custom_call.1} parent=11 // pred_check
          %p226 = pneg %p59
        $region14: #{tpu_custom_call.1} parent=11 // pred_check_branch
          %228 = sbr.rel (%p226) target = $region16
        $region15: #{tpu_custom_call.1} parent=11 // pred_region
          %s229 = smul.u32 2, %s31
          %p230 = scmp.lt.s32.totalorder %s229, 1
          %s231 = scalar_select %p230, %s229, 1
          %s232 = smul.addr %s231, 2
          %s233 = scalar_lea.vmem %s0, %s232
          %s234 = smul.u32 2, %s31
        $region16: #{tpu_custom_call.1} parent=11 // pred_fallthru
          _
        // Predicated region
        $region17: #{tpu_custom_call.1} parent=11 // pred_check
          %p235 = pneg %p108
        $region18: #{tpu_custom_call.1} parent=11 // pred_check_branch
          %237 = sbr.rel (%p235) target = $region20
        $region19: #{tpu_custom_call.1} parent=11 // pred_region
          %239 = vsyncadd [#allocation4], 0
          %s240 = sshll.u32 %s2, 4
          %s241 = int_to_ptr.vmem [resolvable:$true] %s240
          %246 = dma.vmem_to_smem %s241, 128, [#allocation2], [#allocation4], 64, 64, 4
        $region20: #{tpu_custom_call.1} parent=11 // pred_fallthru
          _
        // Predicated region
        $region21: #{tpu_custom_call.1} parent=11 // pred_check
          %p247 = pneg %p129
        $region22: #{tpu_custom_call.1} parent=11 // pred_check_branch
          %249 = sbr.rel (%p247) target = $region24
        $region23: #{tpu_custom_call.1} parent=11 // pred_region
          %251 = vsyncadd [#allocation6], 0
          %s252 = sshll.u32 %s3, 4
          %s253 = int_to_ptr.vmem [resolvable:$true] %s252
          %258 = dma.vmem_to_smem %s253, 128, [#allocation5], [#allocation6], 64, 64, 4
        $region24: #{tpu_custom_call.1} parent=11 // pred_fallthru
          _
      $region12: #{tpu_custom_call.1} parent=5 // pred_fallthru
        _
      %p259 = scmp.lt.s32.totalorder %s21, 2
      // Predicated region
      $region25: #{tpu_custom_call.1} parent=5 // pred_check
        %p260 = pneg %p259
      $region26: #{tpu_custom_call.1} parent=5 // pred_check_branch
        %262 = sbr.rel (%p260) target = $region28
      $region27: #{tpu_custom_call.1} parent=5 // pred_region
        // Predicated region
        $region29: #{tpu_custom_call.1} parent=27 // pred_check
          %p263 = pneg %p81
        $region30: #{tpu_custom_call.1} parent=27 // pred_check_branch
          %265 = sbr.rel (%p263) target = $region32
        $region31: #{tpu_custom_call.1} parent=27 // pred_region
          %s266 = smul.u32 2, %s29
          %p267 = scmp.lt.s32.totalorder %s28, 1
          %s268 = scalar_select %p267, %s28, 1
          %p269 = scmp.lt.s32.totalorder %s266, 1
          %s270 = scalar_select %p269, %s266, 1
          %s271 = smul.addr %s268, 2
          %s272 = sadd.s32 %s270, %s271
          %s273 = scalar_lea.vmem %s1, %s272
          %s274 = smul.u32 2, %s29
        $region32: #{tpu_custom_call.1} parent=27 // pred_fallthru
          _
        // Predicated region
        $region33: #{tpu_custom_call.1} parent=27 // pred_check
          %p275 = pneg %p149
        $region34: #{tpu_custom_call.1} parent=27 // pred_check_branch
          %277 = sbr.rel (%p275) target = $region36
        $region35: #{tpu_custom_call.1} parent=27 // pred_region
          %p278 = scmp.lt.s32.totalorder %s28, 1
          %s279 = scalar_select %p278, %s28, 1
          %s280 = smul.addr %s279, 8
          %s281 = smul.addr %s280, 8
          %s282 = scalar_lea.vmem %s4, %s281
        $region36: #{tpu_custom_call.1} parent=27 // pred_fallthru
          _
      $region28: #{tpu_custom_call.1} parent=5 // pred_fallthru
        _
      %p283 = scmp.le.s32.totalorder 1, %s21
      %p284 = scmp.lt.s32.totalorder %s21, 3
      %p285 = pnand %p283, %p284
      %p286 = pneg %p285
      // Predicated region
      $region37: #{tpu_custom_call.1} parent=5 // pred_check
        _
      $region38: #{tpu_custom_call.1} parent=5 // pred_check_branch
        %288 = sbr.rel (%p285) target = $region40
      $region39: #{tpu_custom_call.1} parent=5 // pred_region
        %s289 = ssub.s32 %s21, 1
        // Predicated region
        $region41: #{tpu_custom_call.1} parent=39 // pred_check
          %p290 = pneg %p108
        $region42: #{tpu_custom_call.1} parent=39 // pred_check_branch
          %292 = sbr.rel (%p290) target = $region44
        $region43: #{tpu_custom_call.1} parent=39 // pred_region
          %294 = dma.done [#allocation4], 128
        $region44: #{tpu_custom_call.1} parent=39 // pred_fallthru
          _
        // Predicated region
        $region45: #{tpu_custom_call.1} parent=39 // pred_check
          %p295 = pneg %p129
        $region46: #{tpu_custom_call.1} parent=39 // pred_check_branch
          %297 = sbr.rel (%p295) target = $region48
        $region47: #{tpu_custom_call.1} parent=39 // pred_region
          %299 = dma.done [#allocation6], 128
        $region48: #{tpu_custom_call.1} parent=39 // pred_fallthru
          _
        %300 = sfence
        %s301 = smul.u32 2, %s31
        %p302 = scmp.lt.s32.totalorder %s301, 1
        %s303 = scalar_select %p302, %s301, 1
        %s304 = smul.addr %s303, 2
        %s305 = scalar_lea.vmem %s0, %s304
        %p306 = pneg %p59
        %p307 = pneg %p56
        %s308 = smul.u32 2, %s31
        %p309 = scmp.lt.s32.totalorder %s30, 1
        %s310 = scalar_select %p309, %s30, 1
        %p311 = scmp.lt.s32.totalorder %s308, 1
        %s312 = scalar_select %p311, %s308, 1
        %s313 = smul.addr %s310, 2
        %s314 = sadd.s32 %s312, %s313
        %s315 = scalar_lea.vmem %s1, %s314
        %p316 = pneg %p87
        %p317 = pneg %p84
        %p318 = pneg %p108
        %p319 = pneg %p105
        %p320 = pneg %p129
        %p321 = pneg %p126
        %p322 = scmp.lt.s32.totalorder %s30, 1
        %s323 = scalar_select %p322, %s30, 1
        %s324 = smul.addr %s323, 8
        %s325 = smul.addr %s324, 8
        %s326 = scalar_lea.vmem %s4, %s325
        %p327 = pneg %p155
        %p328 = pneg %p152
        %p329 = pneg %p183
        %p330 = pneg %p180
        %s331 = sand.u32 %s170, 1
        %s332 = scalar_lea.sflag [#allocation3], %s331
        %s333 = sand.u32 %s170, 1
        %s334 = smul.addr %s333, 8
        %s335 = scalar_lea.vmem [#allocation7], %s334
        %p336 = pneg %p211
        %p337 = pneg %p208
        %s338 = sand.u32 %s198, 1
        %s339 = scalar_lea.sflag [#allocation9], %s338
        %s340 = sand.u32 %s198, 1
        %s341 = smul.addr %s340, 2
        %s342 = scalar_lea.vmem [#allocation8], %s341
        %s343 = smul.u32 2, %s31
        %p344 = scmp.lt.s32.totalorder %s343, 1
        %s345 = scalar_select %p344, %s343, 1
        %s346 = smul.addr %s345, 2
        %s347 = scalar_lea.vmem %s0, %s346
        %s348 = smul.u32 2, %s31
        %s349 = smul.u32 2, %s31
        %p350 = scmp.lt.s32.totalorder %s30, 1
        %s351 = scalar_select %p350, %s30, 1
        %p352 = scmp.lt.s32.totalorder %s349, 1
        %s353 = scalar_select %p352, %s349, 1
        %s354 = smul.addr %s351, 2
        %s355 = sadd.s32 %s353, %s354
        %s356 = scalar_lea.vmem %s1, %s355
        %s357 = smul.u32 2, %s31
        %p358 = scmp.lt.s32.totalorder %s30, 1
        %s359 = scalar_select %p358, %s30, 1
        %s360 = smul.addr %s359, 8
        %s361 = smul.addr %s360, 8
        %s362 = scalar_lea.vmem %s4, %s361
        %s363 = smul.u32 2, %s31
        %s364 = smul.u32 2, %s31
        %v365 = vld [vmem:[%s347] ss:$2 sm:$0x3]
        %s366 = scalar_lea.vmem %s347, 1
        %v367 = vld [vmem:[%s366] ss:$2 sm:$0x3]
        %v368 = vld [vmem:[%s356] sm:$0x3]
        %s369 = smul.u32 %s30, 4
        %s370 = smul.u32 %s369, 128
        %s371 = sld [smem:[#allocation2 + %s370]]
        %v372 = vstv %s371
        %v373 = vmul.f32 %v372, %v365
        %s374 = sadd.s32 %s370, 1
        %s375 = sld [smem:[#allocation2 + %s374]]
        %v376 = vstv %s375
        %v377 = vmul.f32 %v376, %v367
        %v378 = vadd.f32 %v373, %v377
        %s379 = sadd.s32 %s370, 2
        %s380 = sld [smem:[#allocation2 + %s379]]
        %v381 = vstv %s380
        %v382 = vadd.f32 %v378, %v381
        %v383 = vmul.f32 %v382, %v368
        %s384 = sadd.s32 1, %s369
        %s385 = smul.u32 %s384, 128
        %s386 = sld [smem:[#allocation2 + %s385]]
        %v387 = vstv %s386
        %v388 = vmul.f32 %v387, %v365
        %s389 = sadd.s32 %s385, 1
        %s390 = sld [smem:[#allocation2 + %s389]]
        %v391 = vstv %s390
        %v392 = vmul.f32 %v391, %v367
        %v393 = vadd.f32 %v388, %v392
        %s394 = sadd.s32 %s385, 2
        %s395 = sld [smem:[#allocation2 + %s394]]
        %v396 = vstv %s395
        %v397 = vadd.f32 %v393, %v396
        %v398 = vmul.f32 %v397, %v368
        %s399 = sadd.s32 2, %s369
        %s400 = smul.u32 %s399, 128
        %s401 = sld [smem:[#allocation2 + %s400]]
        %v402 = vstv %s401
        %v403 = vmul.f32 %v402, %v365
        %s404 = sadd.s32 %s400, 1
        %s405 = sld [smem:[#allocation2 + %s404]]
        %v406 = vstv %s405
        %v407 = vmul.f32 %v406, %v367
        %v408 = vadd.f32 %v403, %v407
        %s409 = sadd.s32 %s400, 2
        %s410 = sld [smem:[#allocation2 + %s409]]
        %v411 = vstv %s410
        %v412 = vadd.f32 %v408, %v411
        %v413 = vmul.f32 %v412, %v368
        %s414 = sld [smem:[#allocation5 + %s370]]
        %v415 = vstv %s414
        %v416 = vmul.f32 %v415, %v383
        %s417 = sld [smem:[#allocation5 + %s374]]
        %v418 = vstv %s417
        %v419 = vmul.f32 %v418, %v398
        %v420 = vadd.f32 %v416, %v419
        %s421 = sld [smem:[#allocation5 + %s379]]
        %v422 = vstv %s421
        %v423 = vmul.f32 %v422, %v413
        %v424 = vadd.f32 %v420, %v423
        %s425 = sadd.s32 %s370, 3
        %s426 = sld [smem:[#allocation5 + %s425]]
        %v427 = vstv %s426
        %v428 = vadd.f32 %v424, %v427
        %s429 = sld [smem:[#allocation5 + %s385]]
        %v430 = vstv %s429
        %v431 = vmul.f32 %v430, %v383
        %s432 = sld [smem:[#allocation5 + %s389]]
        %v433 = vstv %s432
        %v434 = vmul.f32 %v433, %v398
        %v435 = vadd.f32 %v431, %v434
        %s436 = sld [smem:[#allocation5 + %s394]]
        %v437 = vstv %s436
        %v438 = vmul.f32 %v437, %v413
        %v439 = vadd.f32 %v435, %v438
        %s440 = sadd.s32 %s385, 3
        %s441 = sld [smem:[#allocation5 + %s440]]
        %v442 = vstv %s441
        %v443 = vadd.f32 %v439, %v442
        %s444 = sld [smem:[#allocation5 + %s400]]
        %v445 = vstv %s444
        %v446 = vmul.f32 %v445, %v383
        %s447 = sld [smem:[#allocation5 + %s404]]
        %v448 = vstv %s447
        %v449 = vmul.f32 %v448, %v398
        %v450 = vadd.f32 %v446, %v449
        %s451 = sld [smem:[#allocation5 + %s409]]
        %v452 = vstv %s451
        %v453 = vmul.f32 %v452, %v413
        %v454 = vadd.f32 %v450, %v453
        %s455 = sadd.s32 %s400, 3
        %s456 = sld [smem:[#allocation5 + %s455]]
        %v457 = vstv %s456
        %v458 = vadd.f32 %v454, %v457
        %v459 = vadd.f32 %v458, 1e-08
        %v460 = vrcp.pop %v459
        %v461 = vmul.f32 %v459, %v460
        %v462 = vsub.f32 1.0, %v461
        %v463 = vmul.f32 %v460, %v462
        %v464 = vadd.f32 %v460, %v463
        %vm465 = vweird.f32 %v459
        %vm466 = vweird.f32 %v460
        %vm467 = vmor %vm465, %vm466
        %v468 = vsel %vm467, %v460, %v464
        %v469 = vand.u32 2147483647, %v459
        %vm470 = vcmp.eq.f32.partialorder %v469, 8.507059e+37
        %v471 = vand.u32 %v459, 2147483648
        %v472 = vor.u32 1.1754944e-38, %v471
        %v473 = vsel %vm470, %v472, %v468
        %v474 = vmul.f32 %v428, %v473
        %v475 = vmul.f32 %v443, %v473
        %v476 = vmax.f32 %v474, 0.0
        %v477 = vmin.f32 %v476, 15.0
        %v478 = vmax.f32 %v475, 0.0
        %v479 = vmin.f32 %v478, 15.0
        %v480 = vcvt.f32.s32.to.zero.pseudo %v477
        %v481 = vcvt.f32.s32.to.zero.pseudo %v479
        %v482 = vcvt.s32.f32 %v480
        %v483 = vsub.f32 %v477, %v482
        %v484 = vcvt.s32.f32 %v481
        %v485 = vsub.f32 %v479, %v484
        %v486 = vadd.s32 %v480, 1
        %vm487 = vcmp.lt.s32.totalorder %v486, 15
        %v488 = vsel %vm487, %v486, 15
        %v489 = vadd.s32 %v481, 1
        %vm490 = vcmp.lt.s32.totalorder %v489, 15
        %v491 = vsel %vm490, %v489, 15
        %v492 = vlaneseq
        %v493 = vshrl.u32 %v492, 7
        %v494 = vadd.s32 %v493, 8
        %v495 = vsub.f32 1.0, %v483
        %v496 = vperm.slane %v480, 0
        %v497 = vperm.slane %v480, 1
        %vm498 = vcmp.eq.s32.totalorder %v493, %v496
        %vm499 = vcmp.eq.s32.totalorder %v493, %v497
        %vm500 = vcmp.eq.s32.totalorder %v494, %v496
        %vm501 = vcmp.eq.s32.totalorder %v494, %v497
        %v503 = vperm.slane %v495, 0
        %v504 = vperm.slane %v495, 1
        %v507 = vsel %vm498, %v503, 0.0
        %v508 = vsel %vm499, %v504, 0.0
        %v509 = vsel %vm500, %v503, 0.0
        %v510 = vsel %vm501, %v504, 0.0
        %v511 = vperm.slane %v488, 0
        %v512 = vperm.slane %v488, 1
        %vm513 = vcmp.eq.s32.totalorder %v493, %v511
        %vm514 = vcmp.eq.s32.totalorder %v493, %v512
        %vm515 = vcmp.eq.s32.totalorder %v494, %v511
        %vm516 = vcmp.eq.s32.totalorder %v494, %v512
        %v518 = vperm.slane %v483, 0
        %v519 = vperm.slane %v483, 1
        %v522 = vsel %vm513, %v518, 0.0
        %v523 = vsel %vm514, %v519, 0.0
        %v524 = vsel %vm515, %v518, 0.0
        %v525 = vsel %vm516, %v519, 0.0
        %v526 = vadd.f32 %v507, %v522
        %v527 = vadd.f32 %v508, %v523
        %v528 = vadd.f32 %v509, %v524
        %v529 = vadd.f32 %v510, %v525
        %v530 = vsub.f32 1.0, %v485
        %v531 = vperm.slane %v481, 0
        %v532 = vperm.slane %v481, 1
        %vm533 = vcmp.eq.s32.totalorder %v493, %v531
        %vm534 = vcmp.eq.s32.totalorder %v493, %v532
        %vm535 = vcmp.eq.s32.totalorder %v494, %v531
        %vm536 = vcmp.eq.s32.totalorder %v494, %v532
        %v538 = vperm.slane %v530, 0
        %v539 = vperm.slane %v530, 1
        %v542 = vsel %vm533, %v538, 0.0
        %v543 = vsel %vm534, %v539, 0.0
        %v544 = vsel %vm535, %v538, 0.0
        %v545 = vsel %vm536, %v539, 0.0
        %v546 = vperm.slane %v491, 0
        %v547 = vperm.slane %v491, 1
        %vm548 = vcmp.eq.s32.totalorder %v493, %v546
        %vm549 = vcmp.eq.s32.totalorder %v493, %v547
        %vm550 = vcmp.eq.s32.totalorder %v494, %v546
        %vm551 = vcmp.eq.s32.totalorder %v494, %v547
        %v553 = vperm.slane %v485, 0
        %v554 = vperm.slane %v485, 1
        %v557 = vsel %vm548, %v553, 0.0
        %v558 = vsel %vm549, %v554, 0.0
        %v559 = vsel %vm550, %v553, 0.0
        %v560 = vsel %vm551, %v554, 0.0
        %v561 = vadd.f32 %v542, %v557
        %v562 = vadd.f32 %v543, %v558
        %v563 = vadd.f32 %v544, %v559
        %v564 = vadd.f32 %v545, %v560
        %v565 = vld [vmem:[%s362] sm:$0xff]
        %v566 = vld [vmem:[%s362 + $0x8] sm:$0xff]
        %v567 = vld [vmem:[%s362 + $0x10] sm:$0xff]
        %v568 = vld [vmem:[%s362 + $0x18] sm:$0xff]
        %v569 = vld [vmem:[%s362 + $0x20] sm:$0xff]
        %v570 = vld [vmem:[%s362 + $0x28] sm:$0xff]
        %v571 = vld [vmem:[%s362 + $0x30] sm:$0xff]
        %v572 = vld [vmem:[%s362 + $0x38] sm:$0xff]
        %vm573 = vcmask 130048
        %v575 = vsel %vm573, %v565, 0
        %v578 = vsel %vm573, %v566, 0
        %v581 = vsel %vm573, %v567, 0
        %v584 = vsel %vm573, %v568, 0
        %v587 = vsel %vm573, %v569, 0
        %v590 = vsel %vm573, %v570, 0
        %v593 = vsel %vm573, %v571, 0
        %v596 = vsel %vm573, %v572, 0
        %598 = vmatpush.msra.mxu0 0.0
        %599 = vmatpush.msra.mxu0 0.0
        %600 = vmatpush.msra.mxu0 0.0
        %601 = vmatpush.msra.mxu0 0.0
        %602 = vmatpush.msra.mxu0 0.0
        %603 = vmatpush.msra.mxu0 0.0
        %604 = vmatpush.msra.mxu0 0.0
        %605 = vmatpush.msra.mxu0 0.0
        %606 = vmatpush.msra.mxu0 0.0
        %607 = vmatpush.msra.mxu0 0.0
        %608 = vmatpush.msra.mxu0 0.0
        %609 = vmatpush.msra.mxu0 0.0
        %610 = vmatpush.msra.mxu0 0.0
        %611 = vmatpush.msra.mxu0 0.0
        %612 = vmatpush.msra.mxu0 %v528
        %613 = vmatpush.msra.mxu0 %v526
        %614 = vmatmul.f32.gmra.mxu0 %v575
        %v615 = vpop.f32.mrf.mxu0
        %v616 = vadd.f32 0.0, %v615
        %617 = vmatmul.f32.gmra.mxu0 %v578
        %v618 = vpop.f32.mrf.mxu0
        %v619 = vadd.f32 0.0, %v618
        %620 = vmatmul.f32.gmra.mxu0 %v581
        %v621 = vpop.f32.mrf.mxu0
        %v622 = vadd.f32 0.0, %v621
        %623 = vmatmul.f32.gmra.mxu0 %v584
        %v624 = vpop.f32.mrf.mxu0
        %v625 = vadd.f32 0.0, %v624
        %626 = vmatmul.f32.gmra.mxu0 %v587
        %v627 = vpop.f32.mrf.mxu0
        %v628 = vadd.f32 0.0, %v627
        %629 = vmatmul.f32.gmra.mxu0 %v590
        %v630 = vpop.f32.mrf.mxu0
        %v631 = vadd.f32 0.0, %v630
        %632 = vmatmul.f32.gmra.mxu0 %v593
        %v633 = vpop.f32.mrf.mxu0
        %v634 = vadd.f32 0.0, %v633
        %635 = vmatmul.f32.gmra.mxu0 %v596
        %v636 = vpop.f32.mrf.mxu0
        %v637 = vadd.f32 0.0, %v636
        %638 = vdwg.mxu0
        %639 = vmatpush.msra.mxu0 0.0
        %640 = vmatpush.msra.mxu0 0.0
        %641 = vmatpush.msra.mxu0 0.0
        %642 = vmatpush.msra.mxu0 0.0
        %643 = vmatpush.msra.mxu0 0.0
        %644 = vmatpush.msra.mxu0 0.0
        %645 = vmatpush.msra.mxu0 0.0
        %646 = vmatpush.msra.mxu0 0.0
        %647 = vmatpush.msra.mxu0 0.0
        %648 = vmatpush.msra.mxu0 0.0
        %649 = vmatpush.msra.mxu0 0.0
        %650 = vmatpush.msra.mxu0 0.0
        %651 = vmatpush.msra.mxu0 0.0
        %652 = vmatpush.msra.mxu0 0.0
        %653 = vmatpush.msra.mxu0 %v529
        %654 = vmatpush.msra.mxu0 %v527
        %655 = vmatmul.f32.gmra.mxu0 %v575
        %v656 = vpop.f32.mrf.mxu0
        %v657 = vadd.f32 0.0, %v656
        %658 = vmatmul.f32.gmra.mxu0 %v578
        %v659 = vpop.f32.mrf.mxu0
        %v660 = vadd.f32 0.0, %v659
        %661 = vmatmul.f32.gmra.mxu0 %v581
        %v662 = vpop.f32.mrf.mxu0
        %v663 = vadd.f32 0.0, %v662
        %664 = vmatmul.f32.gmra.mxu0 %v584
        %v665 = vpop.f32.mrf.mxu0
        %v666 = vadd.f32 0.0, %v665
        %667 = vmatmul.f32.gmra.mxu0 %v587
        %v668 = vpop.f32.mrf.mxu0
        %v669 = vadd.f32 0.0, %v668
        %670 = vmatmul.f32.gmra.mxu0 %v590
        %v671 = vpop.f32.mrf.mxu0
        %v672 = vadd.f32 0.0, %v671
        %673 = vmatmul.f32.gmra.mxu0 %v593
        %v674 = vpop.f32.mrf.mxu0
        %v675 = vadd.f32 0.0, %v674
        %676 = vmatmul.f32.gmra.mxu0 %v596
        %v677 = vpop.f32.mrf.mxu0
        %v678 = vadd.f32 0.0, %v677
        %679 = vdwg.mxu0
        %v680 = vmul.f32 %v616, %v561
        %v681 = vmul.f32 %v657, %v562
        %v682 = vmul.f32 %v619, %v563
        %v683 = vmul.f32 %v660, %v564
        %v684 = vadd.f32 %v680, %v682
        %v685 = vrot.slane %v684, 4
        %v686 = vadd.f32 %v684, %v685
        %v687 = vrot.slane %v686, 2
        %v688 = vadd.f32 %v686, %v687
        %v689 = vrot.slane %v688, 1
        %v690 = vadd.f32 %v688, %v689
        %v691 = vadd.f32 %v681, %v683
        %v692 = vrot.slane %v691, 4
        %v693 = vadd.f32 %v691, %v692
        %v694 = vrot.slane %v693, 2
        %v695 = vadd.f32 %v693, %v694
        %v696 = vrot.slane %v695, 1
        %v697 = vadd.f32 %v695, %v696
        %v698 = vmul.f32 %v622, %v561
        %v699 = vmul.f32 %v663, %v562
        %v700 = vmul.f32 %v625, %v563
        %v701 = vmul.f32 %v666, %v564
        %v702 = vadd.f32 %v698, %v700
        %v703 = vrot.slane %v702, 4
        %v704 = vadd.f32 %v702, %v703
        %v705 = vrot.slane %v704, 2
        %v706 = vadd.f32 %v704, %v705
        %v707 = vrot.slane %v706, 1
        %v708 = vadd.f32 %v706, %v707
        %v709 = vadd.f32 %v699, %v701
        %v710 = vrot.slane %v709, 4
        %v711 = vadd.f32 %v709, %v710
        %v712 = vrot.slane %v711, 2
        %v713 = vadd.f32 %v711, %v712
        %v714 = vrot.slane %v713, 1
        %v715 = vadd.f32 %v713, %v714
        %v716 = vmul.f32 %v628, %v561
        %v717 = vmul.f32 %v669, %v562
        %v718 = vmul.f32 %v631, %v563
        %v719 = vmul.f32 %v672, %v564
        %v720 = vadd.f32 %v716, %v718
        %v721 = vrot.slane %v720, 4
        %v722 = vadd.f32 %v720, %v721
        %v723 = vrot.slane %v722, 2
        %v724 = vadd.f32 %v722, %v723
        %v725 = vrot.slane %v724, 1
        %v726 = vadd.f32 %v724, %v725
        %v727 = vadd.f32 %v717, %v719
        %v728 = vrot.slane %v727, 4
        %v729 = vadd.f32 %v727, %v728
        %v730 = vrot.slane %v729, 2
        %v731 = vadd.f32 %v729, %v730
        %v732 = vrot.slane %v731, 1
        %v733 = vadd.f32 %v731, %v732
        %v734 = vmul.f32 %v634, %v561
        %v735 = vmul.f32 %v675, %v562
        %v736 = vmul.f32 %v637, %v563
        %v737 = vmul.f32 %v678, %v564
        %v738 = vadd.f32 %v734, %v736
        %v739 = vrot.slane %v738, 4
        %v740 = vadd.f32 %v738, %v739
        %v741 = vrot.slane %v740, 2
        %v742 = vadd.f32 %v740, %v741
        %v743 = vrot.slane %v742, 1
        %v744 = vadd.f32 %v742, %v743
        %v745 = vadd.f32 %v735, %v737
        %v746 = vrot.slane %v745, 4
        %v747 = vadd.f32 %v745, %v746
        %v748 = vrot.slane %v747, 2
        %v749 = vadd.f32 %v747, %v748
        %v750 = vrot.slane %v749, 1
        %v751 = vadd.f32 %v749, %v750
        %vm752 = vcmask 1040384
        %v753 = vsel %vm752, %v690, %v708
        %v754 = vsel %vm752, %v697, %v715
        %vm755 = vcmask 1041408
        %v756 = vsel %vm755, %v753, %v726
        %v757 = vsel %vm755, %v754, %v733
        %vm758 = vcmask 1042432
        %v759 = vsel %vm758, %v756, %v744
        %v760 = vsel %vm758, %v757, %v751
        %v763 = vrot.slane %v760, 4
        %vm764 = vcmask 1043456
        %v765 = vsel %vm764, %v759, %v763
        %767 = vst [vmem:[%s335] sm:$0xff] %v765
        %vm768 = vcmp.ge.f32.partialorder %v474, 0.0
        %vm769 = vcmp.le.f32.partialorder %v474, 15.0
        %vm770 = vmand %vm768, %vm769
        %vm771 = vcmp.ge.f32.partialorder %v475, 0.0
        %vm772 = vmand %vm770, %vm771
        %vm773 = vcmp.le.f32.partialorder %v475, 15.0
        %vm774 = vmand %vm772, %vm773
        %v775 = vsel %vm774, 1, 0
        %v776 = vcvt.s32.f32 %v775
        %v777 = vlaneseq
        %vm778 = vcmp.ge.s32.totalorder %v777, 0
        %vm779 = vcmp.lt.s32.totalorder %v777, 256
        %vm780 = vmand %vm778, %vm779
        %781 = vst.msk [vmem:[%s342] sm:$0x3] %vm780, %v776
        %s782 = sand.u32 %s170, 1
        %s783 = scalar_lea.sflag [#allocation3], %s782
        %s784 = sand.u32 %s170, 1
        %s785 = smul.addr %s784, 8
        %s786 = scalar_lea.vmem [#allocation7], %s785
        %s787 = sand.u32 %s198, 1
        %s788 = scalar_lea.sflag [#allocation9], %s787
        %s789 = sand.u32 %s198, 1
        %s790 = smul.addr %s789, 2
        %s791 = scalar_lea.vmem [#allocation8], %s790
        // Predicated region
        $region49: #{tpu_custom_call.1} parent=39 // pred_check
          %p792 = pneg %p180
        $region50: #{tpu_custom_call.1} parent=39 // pred_check_branch
          %794 = sbr.rel (%p792) target = $region52
        $region51: #{tpu_custom_call.1} parent=39 // pred_region
          %s795 = smul.u32 2, %s31
          %797 = vsyncadd %s783, 0
          %s798 = smul.addr %s30, 2
          %s799 = sadd.s32 %s795, %s798
          %s800 = smul.addr %s799, 4
          %s801 = scalar_lea.hbm %s5, %s800
          %s803 = sshll.u32 %s786, 4
          %s804 = int_to_ptr.vmem [resolvable:$true] %s803
          %s805 = sshll.u32 %s801, 4
          %s806 = int_to_ptr.hbm [resolvable:$true] %s805
          %808 = dma.vmem_to_hbm [thread:$0]  %s804, 128, %s806, %s783
        $region52: #{tpu_custom_call.1} parent=39 // pred_fallthru
          _
        // Predicated region
        $region53: #{tpu_custom_call.1} parent=39 // pred_check
          %p809 = pneg %p208
        $region54: #{tpu_custom_call.1} parent=39 // pred_check_branch
          %811 = sbr.rel (%p809) target = $region56
        $region55: #{tpu_custom_call.1} parent=39 // pred_region
          %s812 = smul.u32 2, %s31
          %814 = vsyncadd %s788, 0
          %s815 = smul.addr %s30, 2
          %s816 = sadd.s32 %s812, %s815
          %s817 = scalar_lea.hbm %s6, %s816
          %s819 = sshll.u32 %s791, 4
          %s820 = int_to_ptr.vmem [resolvable:$true] %s819
          %s821 = sshll.u32 %s817, 4
          %s822 = int_to_ptr.hbm [resolvable:$true] %s821
          %824 = dma.vmem_to_hbm [thread:$0]  %s820, 32, %s822, %s788
        $region56: #{tpu_custom_call.1} parent=39 // pred_fallthru
          _
      $region40: #{tpu_custom_call.1} parent=5 // pred_fallthru
        _
      %p825 = scmp.le.s32.totalorder 2, %s21
      // Predicated region
      $region57: #{tpu_custom_call.1} parent=5 // pred_check
        %p826 = pneg %p825
      $region58: #{tpu_custom_call.1} parent=5 // pred_check_branch
        %828 = sbr.rel (%p826) target = $region60
      $region59: #{tpu_custom_call.1} parent=5 // pred_region
        %s829 = ssub.s32 %s21, 2
        // Predicated region
        $region61: #{tpu_custom_call.1} parent=59 // pred_check
          %p830 = pneg %p186
        $region62: #{tpu_custom_call.1} parent=59 // pred_check_branch
          %832 = sbr.rel (%p830) target = $region64
        $region63: #{tpu_custom_call.1} parent=59 // pred_region
          %s833 = sand.u32 %s171, 1
          %s834 = scalar_lea.sflag [#allocation3], %s833
          %s835 = sand.u32 %s171, 1
          %s836 = smul.addr %s835, 8
          %s837 = scalar_lea.vmem [#allocation7], %s836
          %839 = dma.done %s834, 128
        $region64: #{tpu_custom_call.1} parent=59 // pred_fallthru
          _
        // Predicated region
        $region65: #{tpu_custom_call.1} parent=59 // pred_check
          %p840 = pneg %p214
        $region66: #{tpu_custom_call.1} parent=59 // pred_check_branch
          %842 = sbr.rel (%p840) target = $region68
        $region67: #{tpu_custom_call.1} parent=59 // pred_region
          %s843 = sand.u32 %s199, 1
          %s844 = scalar_lea.sflag [#allocation9], %s843
          %s845 = sand.u32 %s199, 1
          %s846 = smul.addr %s845, 2
          %s847 = scalar_lea.vmem [#allocation8], %s846
          %849 = dma.done %s844, 32
        $region68: #{tpu_custom_call.1} parent=59 // pred_fallthru
          _
      $region60: #{tpu_custom_call.1} parent=5 // pred_fallthru
        _
    $region6: #{tpu_custom_call.1} parent=1 // loop_footer
      %s25 = sadd.s32 1, %s21
    $region7: #{tpu_custom_call.1} parent=1 // loop_footer_branch
      %20 = sbr.rel target = $region3
    $region8: #{tpu_custom_call.1} parent=1 // loop_exit
      _
    %850 = vsyncpa [#allocation3], 1
    %s851 = scalar_lea.sflag [#allocation3], 1
    %852 = vsyncpa %s851, 1
    %853 = vsyncpa [#allocation9], 1
    %s854 = scalar_lea.sflag [#allocation9], 1
    %855 = vsyncpa %s854, 1
    %856 = vsyncpa [#allocation4], 1
    %s857 = scalar_lea.sflag [#allocation4], 1
    %858 = vsyncpa %s857, 1
    %859 = vsyncpa [#allocation6], 1

</llo_original>
